<compile_context>
chip_gen: v5e
topology: v5e:2x2
jax: 0.10.0
libtpu: 0.0.40
codegen_flags: <defaults>
</compile_context>

<pallas_src>
import jax
import jax.numpy as jnp
import numpy as np
from jax.experimental import pallas as pl
from jax.experimental.pallas import tpu as pltpu

DIM = 128          # feature dimension of the ResidualBlock
LN_EPS = 1e-5      # nn.LayerNorm default eps
MAX_TB = 4096      # max batch-tile rows: (4096,128) f32 = 2 MiB per buffer


def _gelu(x):
    # TODO(synk): PyTorch nn.GELU() default is the exact erf GELU; the tanh
    # approximation is used because erf lowering is not guaranteed in Mosaic.
    return jax.nn.gelu(x, approximate=True)


def _layer_norm(h, gamma, beta, eps=LN_EPS):
    mean = jnp.mean(h, axis=-1, keepdims=True)
    centered = h - mean
    var = jnp.mean(centered * centered, axis=-1, keepdims=True)
    return centered * jax.lax.rsqrt(var + eps) * gamma + beta


def residual_block_kernel(x_ref, w1_ref, w2_ref, p_ref, out_ref):
    x = x_ref[...]            # (tb, D) f32
    p = p_ref[...]            # (8, D) packed: [b1, g1, be1, b2, g2, be2, pad, pad]
    b1, g1, be1 = p[0:1, :], p[1:2, :], p[2:3, :]
    b2, g2, be2 = p[3:4, :], p[4:5, :], p[5:6, :]

    # Linear -> LayerNorm -> GELU   (Dropout(p=0) in eval mode == identity)
    # bf16 MXU operands with f32 accumulation; elementwise chain stays f32.
    h = jnp.dot(x.astype(jnp.bfloat16), w1_ref[...].astype(jnp.bfloat16),
                preferred_element_type=jnp.float32) + b1
    h = _gelu(_layer_norm(h, g1, be1))
    # Linear -> LayerNorm -> GELU   (Dropout == identity)
    h = jnp.dot(h.astype(jnp.bfloat16), w2_ref[...].astype(jnp.bfloat16),
                preferred_element_type=jnp.float32) + b2
    h = _gelu(_layer_norm(h, g2, be2))
    # Residual add; single lane-dense (tb, 128) store.
    out_ref[...] = x + h


def _round_up(n, m):
    return ((n + m - 1) // m) * m


def _pick_batch_tile(B):
    if B < 8:
        return B                          # single full-array block (sub-sublane batch)
    fit = (B // 8) * 8                    # largest multiple-of-8 tile not exceeding B
    if B <= 1024:
        return min(fit, MAX_TB)           # small batch: 1-2 steps, overhead dominated
    # Large batch: tiles up to MAX_TB, but always >= 2 grid steps so the
    # "parallel" axis can shard across TensorCores (v7x megacore).
    return max(8, min(MAX_TB, _round_up(pl.cdiv(B, 2), 8), fit))


@jax.jit
def residual_block_forward(x, w1, b1, g1, be1, w2, b2, g2, be2):
    B, D = x.shape
    tb = _pick_batch_tile(B)
    # No wrapper pad / slice: the ragged last block (if any) is clipped by Pallas;
    # every op in the kernel is row-local and the final store is masked.
    grid = (pl.cdiv(B, tb),)

    # Pack the six (1, D) vectors into one (8, D) block: one vreg, one DMA stream.
    params = jnp.concatenate(
        [b1.reshape(1, D), g1.reshape(1, D), be1.reshape(1, D),
         b2.reshape(1, D), g2.reshape(1, D), be2.reshape(1, D),
         jnp.zeros((2, D), jnp.float32)], axis=0)

    full = lambda i: (0, 0)               # weights / params replicated across batch tiles
    rows = lambda i: (i, 0)               # activation / output tiles follow the batch axis

    cost = pl.CostEstimate(
        flops=4 * B * D * D + 30 * B * D,          # two (B,D)x(D,D) matmuls + elementwise
        transcendentals=2 * B * D,                 # two GELUs
        bytes_accessed=2 * B * D * 4 + 2 * D * D * 4 + 8 * D * 4,
    )

    return pl.pallas_call(
        residual_block_kernel,
        out_shape=jax.ShapeDtypeStruct((B, D), jnp.float32),
        grid_spec=pltpu.PrefetchScalarGridSpec(
            num_scalar_prefetch=0,
            grid=grid,
            in_specs=[
                pl.BlockSpec((tb, D), rows),   # x
                pl.BlockSpec((D, D), full),    # w1 (in, out) == PyTorch W1.T
                pl.BlockSpec((D, D), full),    # w2 (in, out) == PyTorch W2.T
                pl.BlockSpec((8, D), full),    # packed biases / LN params
                # TODO(synk): pipeline_mode=pl.Buffered(1) on the three constant-index
                # specs would reclaim ~130 KiB of dead double-buffer; not needed at tb<=4096.
            ],
            out_specs=pl.BlockSpec((tb, D), rows),
        ),
        compiler_params=pltpu.CompilerParams(
            dimension_semantics=("parallel",)),    # batch tiles are independent
        cost_estimate=cost,
    )(x, w1, w2, params)


def reference_forward(x, w1, b1, g1, be1, w2, b2, g2, be2):
    h = x @ w1 + b1.reshape(1, -1)
    h = _gelu(_layer_norm(h, g1.reshape(1, -1), be1.reshape(1, -1)))
    h = h @ w2 + b2.reshape(1, -1)
    h = _gelu(_layer_norm(h, g2.reshape(1, -1), be2.reshape(1, -1)))
    return x + h


def init_params(key, dim=DIM):
    ks = iter(jax.random.split(key, 10))
    w1 = jax.random.normal(next(ks), (dim, dim), jnp.float32) / np.sqrt(dim)
    b1 = 0.02 * jax.random.normal(next(ks), (1, dim), jnp.float32)
    g1 = 1.0 + 0.1 * jax.random.normal(next(ks), (1, dim), jnp.float32)
    be1 = 0.1 * jax.random.normal(next(ks), (1, dim), jnp.float32)
    w2 = jax.random.normal(next(ks), (dim, dim), jnp.float32) / np.sqrt(dim)
    b2 = 0.02 * jax.random.normal(next(ks), (1, dim), jnp.float32)
    g2 = 1.0 + 0.1 * jax.random.normal(next(ks), (1, dim), jnp.float32)
    be2 = 0.1 * jax.random.normal(next(ks), (1, dim), jnp.float32)
    return w1, b1, g1, be1, w2, b2, g2, be2


if __name__ == "__main__":
    key = jax.random.PRNGKey(0)
    pkey, xkey = jax.random.split(key)
    params = init_params(pkey)

    # B=8: single aligned tile.  B=20: exercises the ragged (masked) last block.
    for B in (8, 20):
        x = jax.random.normal(jax.random.fold_in(xkey, B), (B, DIM), jnp.float32)
        out = jax.block_until_ready(residual_block_forward(x, *params))
        assert out.shape == (B, DIM)
        ref = reference_forward(x, *params)
        # bf16 matmul operands (f32 accumulation) -> ~1e-2 relative drift vs f32.
        np.testing.assert_allclose(np.asarray(out), np.asarray(ref),
                                   rtol=2e-2, atol=2e-2)
    print("KERNEL_OK")
</pallas_src>

<mosaic_0001>
module attributes {stable_mosaic.version = 11 : i64} {
  func.func @residual_block_kernel(%arg0: i32, %arg1: memref<8x128xf32, #tpu.memory_space<vmem>>, %arg2: memref<128x128xf32, #tpu.memory_space<vmem>>, %arg3: memref<128x128xf32, #tpu.memory_space<vmem>>, %arg4: memref<8x128xf32, #tpu.memory_space<vmem>>, %arg5: memref<8x128xf32, #tpu.memory_space<vmem>>) attributes {dimension_semantics = [#tpu.dimension_semantics<parallel>], iteration_bounds = array<i64: 1>, scalar_prefetch = 0 : i64, scratch_operands = 0 : i64, tpu.core_type = #tpu.core_type<tc>, window_params = [{transform_indices = @transform_0, window_bounds = array<i64: 8, 128>}, {pipeline_mode = #tpu.pipeline_mode<synchronous>, transform_indices = @transform_1, window_bounds = array<i64: 128, 128>}, {pipeline_mode = #tpu.pipeline_mode<synchronous>, transform_indices = @transform_2, window_bounds = array<i64: 128, 128>}, {pipeline_mode = #tpu.pipeline_mode<synchronous>, transform_indices = @transform_3, window_bounds = array<i64: 8, 128>}, {transform_indices = @transform_4, window_bounds = array<i64: 8, 128>}]} {
    %c0 = arith.constant 0 : index
    %c0_0 = arith.constant 0 : index
    %0 = vector.load %arg1[%c0, %c0_0] : memref<8x128xf32, #tpu.memory_space<vmem>>, vector<8x128xf32>
    %c0_1 = arith.constant 0 : index
    %c0_2 = arith.constant 0 : index
    %1 = vector.load %arg4[%c0_1, %c0_2] : memref<8x128xf32, #tpu.memory_space<vmem>>, vector<8x128xf32>
    %2 = vector.extract_strided_slice %1 {offsets = [0, 0], sizes = [1, 128], strides = [1, 1]} : vector<8x128xf32> to vector<1x128xf32>
    %3 = vector.extract_strided_slice %1 {offsets = [1, 0], sizes = [1, 128], strides = [1, 1]} : vector<8x128xf32> to vector<1x128xf32>
    %4 = vector.extract_strided_slice %1 {offsets = [2, 0], sizes = [1, 128], strides = [1, 1]} : vector<8x128xf32> to vector<1x128xf32>
    %5 = vector.extract_strided_slice %1 {offsets = [3, 0], sizes = [1, 128], strides = [1, 1]} : vector<8x128xf32> to vector<1x128xf32>
    %6 = vector.extract_strided_slice %1 {offsets = [4, 0], sizes = [1, 128], strides = [1, 1]} : vector<8x128xf32> to vector<1x128xf32>
    %7 = vector.extract_strided_slice %1 {offsets = [5, 0], sizes = [1, 128], strides = [1, 1]} : vector<8x128xf32> to vector<1x128xf32>
    %8 = arith.truncf %0 : vector<8x128xf32> to vector<8x128xbf16>
    %c0_3 = arith.constant 0 : index
    %c0_4 = arith.constant 0 : index
    %9 = vector.load %arg2[%c0_3, %c0_4] : memref<128x128xf32, #tpu.memory_space<vmem>>, vector<128x128xf32>
    %10 = arith.truncf %9 : vector<128x128xf32> to vector<128x128xbf16>
    %cst = arith.constant dense<0.000000e+00> : vector<8x128xf32>
    %11 = tpu.matmul %8, %10, %cst {dimension_numbers = #tpu.dot_dimension_numbers<[1], [0], [0], [1], [0, 0, 1, 1], [], []>} : vector<8x128xbf16>, vector<128x128xbf16>, vector<8x128xf32> -> vector<8x128xf32>
    %12 = vector.broadcast %2 : vector<1x128xf32> to vector<8x128xf32>
    %13 = arith.addf %11, %12 : vector<8x128xf32>
    %cst_5 = arith.constant dense<0.000000e+00> : vector<8xf32>
    %14 = vector.multi_reduction <add>, %13, %cst_5 [1] : vector<8x128xf32> to vector<8xf32>
    %15 = vector.shape_cast %14 : vector<8xf32> to vector<8x1xf32>
    %cst_6 = arith.constant 1.280000e+02 : f32
    %16 = vector.broadcast %cst_6 : f32 to vector<8x1xf32>
    %17 = arith.divf %15, %16 : vector<8x1xf32>
    %18 = vector.broadcast %17 : vector<8x1xf32> to vector<8x128xf32>
    %19 = arith.subf %13, %18 : vector<8x128xf32>
    %20 = arith.mulf %19, %19 : vector<8x128xf32>
    %cst_7 = arith.constant dense<0.000000e+00> : vector<8xf32>
    %21 = vector.multi_reduction <add>, %20, %cst_7 [1] : vector<8x128xf32> to vector<8xf32>
    %22 = vector.shape_cast %21 : vector<8xf32> to vector<8x1xf32>
    %cst_8 = arith.constant 1.280000e+02 : f32
    %23 = vector.broadcast %cst_8 : f32 to vector<8x1xf32>
    %24 = arith.divf %22, %23 : vector<8x1xf32>
    %cst_9 = arith.constant 9.99999974E-6 : f32
    %25 = vector.broadcast %cst_9 : f32 to vector<8x1xf32>
    %26 = arith.addf %24, %25 : vector<8x1xf32>
    %27 = math.rsqrt %26 : vector<8x1xf32>
    %28 = vector.broadcast %27 : vector<8x1xf32> to vector<8x128xf32>
    %29 = arith.mulf %19, %28 : vector<8x128xf32>
    %30 = vector.broadcast %3 : vector<1x128xf32> to vector<8x128xf32>
    %31 = arith.mulf %29, %30 : vector<8x128xf32>
    %32 = vector.broadcast %4 : vector<1x128xf32> to vector<8x128xf32>
    %33 = arith.addf %31, %32 : vector<8x128xf32>
    %34 = arith.mulf %33, %33 : vector<8x128xf32>
    %35 = arith.mulf %33, %34 : vector<8x128xf32>
    %cst_10 = arith.constant 4.471500e-02 : f32
    %36 = vector.broadcast %cst_10 : f32 to vector<8x128xf32>
    %37 = arith.mulf %36, %35 : vector<8x128xf32>
    %38 = arith.addf %33, %37 : vector<8x128xf32>
    %cst_11 = arith.constant 0.797884583 : f32
    %39 = vector.broadcast %cst_11 : f32 to vector<8x128xf32>
    %40 = arith.mulf %39, %38 : vector<8x128xf32>
    %41 = math.tanh %40 : vector<8x128xf32>
    %cst_12 = arith.constant 1.000000e+00 : f32
    %42 = vector.broadcast %cst_12 : f32 to vector<8x128xf32>
    %43 = arith.addf %42, %41 : vector<8x128xf32>
    %cst_13 = arith.constant 5.000000e-01 : f32
    %44 = vector.broadcast %cst_13 : f32 to vector<8x128xf32>
    %45 = arith.mulf %44, %43 : vector<8x128xf32>
    %46 = arith.mulf %33, %45 : vector<8x128xf32>
    %47 = arith.truncf %46 : vector<8x128xf32> to vector<8x128xbf16>
    %c0_14 = arith.constant 0 : index
    %c0_15 = arith.constant 0 : index
    %48 = vector.load %arg3[%c0_14, %c0_15] : memref<128x128xf32, #tpu.memory_space<vmem>>, vector<128x128xf32>
    %49 = arith.truncf %48 : vector<128x128xf32> to vector<128x128xbf16>
    %cst_16 = arith.constant dense<0.000000e+00> : vector<8x128xf32>
    %50 = tpu.matmul %47, %49, %cst_16 {dimension_numbers = #tpu.dot_dimension_numbers<[1], [0], [0], [1], [0, 0, 1, 1], [], []>} : vector<8x128xbf16>, vector<128x128xbf16>, vector<8x128xf32> -> vector<8x128xf32>
    %51 = vector.broadcast %5 : vector<1x128xf32> to vector<8x128xf32>
    %52 = arith.addf %50, %51 : vector<8x128xf32>
    %cst_17 = arith.constant dense<0.000000e+00> : vector<8xf32>
    %53 = vector.multi_reduction <add>, %52, %cst_17 [1] : vector<8x128xf32> to vector<8xf32>
    %54 = vector.shape_cast %53 : vector<8xf32> to vector<8x1xf32>
    %cst_18 = arith.constant 1.280000e+02 : f32
    %55 = vector.broadcast %cst_18 : f32 to vector<8x1xf32>
    %56 = arith.divf %54, %55 : vector<8x1xf32>
    %57 = vector.broadcast %56 : vector<8x1xf32> to vector<8x128xf32>
    %58 = arith.subf %52, %57 : vector<8x128xf32>
    %59 = arith.mulf %58, %58 : vector<8x128xf32>
    %cst_19 = arith.constant dense<0.000000e+00> : vector<8xf32>
    %60 = vector.multi_reduction <add>, %59, %cst_19 [1] : vector<8x128xf32> to vector<8xf32>
    %61 = vector.shape_cast %60 : vector<8xf32> to vector<8x1xf32>
    %cst_20 = arith.constant 1.280000e+02 : f32
    %62 = vector.broadcast %cst_20 : f32 to vector<8x1xf32>
    %63 = arith.divf %61, %62 : vector<8x1xf32>
    %cst_21 = arith.constant 9.99999974E-6 : f32
    %64 = vector.broadcast %cst_21 : f32 to vector<8x1xf32>
    %65 = arith.addf %63, %64 : vector<8x1xf32>
    %66 = math.rsqrt %65 : vector<8x1xf32>
    %67 = vector.broadcast %66 : vector<8x1xf32> to vector<8x128xf32>
    %68 = arith.mulf %58, %67 : vector<8x128xf32>
    %69 = vector.broadcast %6 : vector<1x128xf32> to vector<8x128xf32>
    %70 = arith.mulf %68, %69 : vector<8x128xf32>
    %71 = vector.broadcast %7 : vector<1x128xf32> to vector<8x128xf32>
    %72 = arith.addf %70, %71 : vector<8x128xf32>
    %73 = arith.mulf %72, %72 : vector<8x128xf32>
    %74 = arith.mulf %72, %73 : vector<8x128xf32>
    %cst_22 = arith.constant 4.471500e-02 : f32
    %75 = vector.broadcast %cst_22 : f32 to vector<8x128xf32>
    %76 = arith.mulf %75, %74 : vector<8x128xf32>
    %77 = arith.addf %72, %76 : vector<8x128xf32>
    %cst_23 = arith.constant 0.797884583 : f32
    %78 = vector.broadcast %cst_23 : f32 to vector<8x128xf32>
    %79 = arith.mulf %78, %77 : vector<8x128xf32>
    %80 = math.tanh %79 : vector<8x128xf32>
    %cst_24 = arith.constant 1.000000e+00 : f32
    %81 = vector.broadcast %cst_24 : f32 to vector<8x128xf32>
    %82 = arith.addf %81, %80 : vector<8x128xf32>
    %cst_25 = arith.constant 5.000000e-01 : f32
    %83 = vector.broadcast %cst_25 : f32 to vector<8x128xf32>
    %84 = arith.mulf %83, %82 : vector<8x128xf32>
    %85 = arith.mulf %72, %84 : vector<8x128xf32>
    %86 = arith.addf %0, %85 : vector<8x128xf32>
    %c0_26 = arith.constant 0 : index
    %c0_27 = arith.constant 0 : index
    %87 = vector.load %arg5[%c0_26, %c0_27] : memref<8x128xf32, #tpu.memory_space<vmem>>, vector<8x128xf32>
    tpu.vector_store %arg5[%c0_26, %c0_27], %86 {strides = array<i32>} : memref<8x128xf32, #tpu.memory_space<vmem>>, vector<8x128xf32>,
    return
  }
  func.func @transform_0(%arg0: i32) -> (i32, i32) {
    %c0_i32 = arith.constant 0 : i32
    %c0_i32_0 = arith.constant 0 : i32
    return %arg0, %c0_i32 : i32, i32
  }
  func.func @transform_1(%arg0: i32) -> (i32, i32) {
    %c0_i32 = arith.constant 0 : i32
    %c0_i32_0 = arith.constant 0 : i32
    %c0_i32_1 = arith.constant 0 : i32
    return %c0_i32, %c0_i32_0 : i32, i32
  }
  func.func @transform_2(%arg0: i32) -> (i32, i32) {
    %c0_i32 = arith.constant 0 : i32
    %c0_i32_0 = arith.constant 0 : i32
    %c0_i32_1 = arith.constant 0 : i32
    return %c0_i32, %c0_i32_0 : i32, i32
  }
  func.func @transform_3(%arg0: i32) -> (i32, i32) {
    %c0_i32 = arith.constant 0 : i32
    %c0_i32_0 = arith.constant 0 : i32
    %c0_i32_1 = arith.constant 0 : i32
    return %c0_i32, %c0_i32_0 : i32, i32
  }
  func.func @transform_4(%arg0: i32) -> (i32, i32) {
    %c0_i32 = arith.constant 0 : i32
    %c0_i32_0 = arith.constant 0 : i32
    return %arg0, %c0_i32 : i32, i32
  }
}

</mosaic_0001>

<llo_original>
// kernel: residual_block_forward.1
$region0: #{residual_block_forward.1}
  #allocation0 [shape = 'u32[]', space=smem, size = 0x4, offset = 0x4, fixed_abs, tag = 'smem constant byte address 0x4 - core index']
  #allocation1 [shape = 'u32[72,128]{1,0:T(1,128)}', space=vmem, size = 0x9000, scoped, tag = 'internal scratch']
  %s0 = inlined_call_operand.vmem [shape: f32[8,128], index: 0, kind: input, shape index: {}]
  %s1 = inlined_call_operand.hbm [shape: f32[128,128], index: 1, kind: input, shape index: {}]
  %s2 = inlined_call_operand.hbm [shape: f32[128,128], index: 2, kind: input, shape index: {}]
  %s3 = inlined_call_operand.vmem [shape: f32[8,128], index: 3, kind: input, shape index: {}]
  %s4 = inlined_call_operand.hbm [shape: f32[8,128], index: 4, kind: output, shape index: {}]
  %s5 = sld [smem:[#allocation0]]
  $region34: #{residual_block_forward.1} parent=0
    _
  %s7 = ssub.s32 1, %s5
  %s8 = scalar_select 0, %s7, %s5
  $region1: #{residual_block_forward.1} parent=0
    #allocation2 [shape = 'u8[65536]{0}', space=vmem, size = 0x10000, scoped, tag = 'input window, operand 1, single buffered']
    #allocation3 [shape = 's32[1]{0}', space=sflag, size = 0x4, scoped, tag = 'scoped memory for residual_block_forward.1']
    #allocation4 [shape = 's32[1]{0}', space=sflag, size = 0x4, scoped, tag = 'scoped memory for residual_block_forward.1']
    #allocation5 [shape = 'u8[65536]{0}', space=vmem, size = 0x10000, scoped, tag = 'input window, operand 2, single buffered']
    #allocation6 [shape = 's32[1]{0}', space=sflag, size = 0x4, scoped, tag = 'scoped memory for residual_block_forward.1']
    #allocation7 [shape = 'u8[4096]{0}', space=vmem, size = 0x1000, scoped, tag = 'output window, operand 0, single buffered']
    %9 = vsyncpa [#allocation3], 0
    %10 = vsyncpa [#allocation6], 0
    %11 = vsyncpa [#allocation4], 0
    // Predicated region
    $region2: #{residual_block_forward.1} parent=1 // pred_check
      _
    $region3: #{residual_block_forward.1} parent=1 // pred_check_branch
      %13 = sbr.rel (0) target = $region5
    $region4: #{residual_block_forward.1} parent=1 // pred_region
      _
    $region5: #{residual_block_forward.1} parent=1 // pred_fallthru
      _
    // Predicated region
    $region6: #{residual_block_forward.1} parent=1 // pred_check
      _
    $region7: #{residual_block_forward.1} parent=1 // pred_check_branch
      %15 = sbr.rel (0) target = $region9
    $region8: #{residual_block_forward.1} parent=1 // pred_region
      %17 = vsyncadd [#allocation3], 0
      %s18 = sshll.u32 %s1, 4
      %s19 = int_to_ptr.hbm [resolvable:$true] %s18
      %s20 = sshll.u32 [#allocation2], 4
      %s21 = int_to_ptr.vmem [resolvable:$true] %s20
      %26 = dma.hbm_to_vmem [thread:$0]  %s19, 2048, %s21, [#allocation3], 128, 128, 8
    $region9: #{residual_block_forward.1} parent=1 // pred_fallthru
      _
    // Predicated region
    $region10: #{residual_block_forward.1} parent=1 // pred_check
      _
    $region11: #{residual_block_forward.1} parent=1 // pred_check_branch
      %28 = sbr.rel (0) target = $region13
    $region12: #{residual_block_forward.1} parent=1 // pred_region
      %30 = vsyncadd [#allocation6], 0
      %s31 = sshll.u32 %s2, 4
      %s32 = int_to_ptr.hbm [resolvable:$true] %s31
      %s33 = sshll.u32 [#allocation5], 4
      %s34 = int_to_ptr.vmem [resolvable:$true] %s33
      %39 = dma.hbm_to_vmem [thread:$0]  %s32, 2048, %s34, [#allocation6], 128, 128, 8
    $region13: #{residual_block_forward.1} parent=1 // pred_fallthru
      _
    // Predicated region
    $region14: #{residual_block_forward.1} parent=1 // pred_check
      _
    $region15: #{residual_block_forward.1} parent=1 // pred_check_branch
      %41 = sbr.rel (0) target = $region17
    $region16: #{residual_block_forward.1} parent=1 // pred_region
      _
    $region17: #{residual_block_forward.1} parent=1 // pred_fallthru
      _
    // Predicated region
    $region18: #{residual_block_forward.1} parent=1 // pred_check
      _
    $region19: #{residual_block_forward.1} parent=1 // pred_check_branch
      %43 = sbr.rel (0) target = $region21
    $region20: #{residual_block_forward.1} parent=1 // pred_region
      %45 = dma.done [#allocation3], 2048
    $region21: #{residual_block_forward.1} parent=1 // pred_fallthru
      _
    // Predicated region
    $region22: #{residual_block_forward.1} parent=1 // pred_check
      _
    $region23: #{residual_block_forward.1} parent=1 // pred_check_branch
      %47 = sbr.rel (0) target = $region25
    $region24: #{residual_block_forward.1} parent=1 // pred_region
      %49 = dma.done [#allocation6], 2048
    $region25: #{residual_block_forward.1} parent=1 // pred_fallthru
      _
    %v50 = vld [vmem:[%s0] sm:$0xff]
    %v51 = vld [vmem:[%s3] sm:$0xff]
    %v52 = vpack.c.bf16 %v50, %v50
    %v53 = vld [vmem:[#allocation2] sm:$0xff]
    %v54 = vld [vmem:[#allocation2 + $0x8] sm:$0xff]
    %v55 = vld [vmem:[#allocation2 + $0x10] sm:$0xff]
    %v56 = vld [vmem:[#allocation2 + $0x18] sm:$0xff]
    %v57 = vld [vmem:[#allocation2 + $0x20] sm:$0xff]
    %v58 = vld [vmem:[#allocation2 + $0x28] sm:$0xff]
    %v59 = vld [vmem:[#allocation2 + $0x30] sm:$0xff]
    %v60 = vld [vmem:[#allocation2 + $0x38] sm:$0xff]
    %v61 = vld [vmem:[#allocation2 + $0x40] sm:$0xff]
    %v62 = vld [vmem:[#allocation2 + $0x48] sm:$0xff]
    %v63 = vld [vmem:[#allocation2 + $0x50] sm:$0xff]
    %v64 = vld [vmem:[#allocation2 + $0x58] sm:$0xff]
    %v65 = vld [vmem:[#allocation2 + $0x60] sm:$0xff]
    %v66 = vld [vmem:[#allocation2 + $0x68] sm:$0xff]
    %v67 = vld [vmem:[#allocation2 + $0x70] sm:$0xff]
    %v68 = vld [vmem:[#allocation2 + $0x78] sm:$0xff]
    %v69 = vpack.c.bf16 %v54, %v53
    %v70 = vpack.c.bf16 %v56, %v55
    %v71 = vpack.c.bf16 %v58, %v57
    %v72 = vpack.c.bf16 %v60, %v59
    %v73 = vpack.c.bf16 %v62, %v61
    %v74 = vpack.c.bf16 %v64, %v63
    %v75 = vpack.c.bf16 %v66, %v65
    %v76 = vpack.c.bf16 %v68, %v67
    %v77 = vperm.slane %v51, 0
    %78 = vmatpush.bf16.msra.mxu0 %v76
    %79 = vmatpush.bf16.msra.mxu0 %v75
    %80 = vmatpush.bf16.msra.mxu0 %v74
    %81 = vmatpush.bf16.msra.mxu0 %v73
    %82 = vmatpush.bf16.msra.mxu0 %v72
    %83 = vmatpush.bf16.msra.mxu0 %v71
    %84 = vmatpush.bf16.msra.mxu0 %v70
    %85 = vmatpush.bf16.msra.mxu0 %v69
    %86 = vmatmul.bf16.gmra.mxu0 %v52
    %v87 = vpop.f32.mrf.mxu0
    %v88 = vadd.f32 %v77, %v87
    %v89 = vpop.f32.mrf.mxu0
    %90 = vdwg.mxu0
    %91 = vadd.xlane.f32.xlu0 %v88
    %v92 = vpop.xlane.xlu0 %91
    %v93 = vrcp.pop 128.0
    %v94 = vmul.f32 128.0, %v93
    %v95 = vsub.f32 1.0, %v94
    %v96 = vmul.f32 %v93, %v95
    %v97 = vadd.f32 %v93, %v96
    %vm98 = vweird.f32 %v93
    %v99 = vsel %vm98, %v93, %v97
    %v100 = vmul.f32 %v92, %v99
    %v101 = vsub.f32 %v88, %v100
    %v102 = vmul.f32 %v101, %v101
    %103 = vadd.xlane.f32.xlu0 %v102
    %v104 = vpop.xlane.xlu0 %103
    %v105 = vmul.f32 %v104, %v99
    %v106 = vadd.f32 %v105, 1e-05
    %v107 = vrsqrt.pop %v106
    %v108 = vmul.f32 %v107, %v106
    %v109 = vmul.f32 %v108, %v107
    %v110 = vmul.f32 0.5, %v109
    %v111 = vsub.f32 1.5, %v110
    %v112 = vmul.f32 %v107, %v111
    %vm113 = vweird.f32 %v106
    %vm114 = vweird.f32 %v107
    %vm115 = vmor %vm113, %vm114
    %v116 = vsel %vm115, %v107, %v112
    %v117 = vmul.f32 %v101, %v116
    %v118 = vperm.slane %v51, 1
    %v119 = vmul.f32 %v117, %v118
    %v120 = vperm.slane %v51, 2
    %v121 = vadd.f32 %v119, %v120
    %v122 = vmul.f32 %v121, %v121
    %v123 = vmul.f32 %v121, %v122
    %v124 = vmul.f32 %v123, 0.044715
    %v125 = vadd.f32 %v121, %v124
    %v126 = vmul.f32 %v125, 0.7978846
    %v127 = vtanh.pop %v126
    %v128 = vadd.f32 %v127, 1.0
    %v129 = vmul.f32 %v128, 0.5
    %v130 = vmul.f32 %v121, %v129
    %v131 = vpack.c.bf16 %v130, %v130
    %v132 = vld [vmem:[#allocation5] sm:$0xff]
    %v133 = vld [vmem:[#allocation5 + $0x8] sm:$0xff]
    %v134 = vld [vmem:[#allocation5 + $0x10] sm:$0xff]
    %v135 = vld [vmem:[#allocation5 + $0x18] sm:$0xff]
    %v136 = vld [vmem:[#allocation5 + $0x20] sm:$0xff]
    %v137 = vld [vmem:[#allocation5 + $0x28] sm:$0xff]
    %v138 = vld [vmem:[#allocation5 + $0x30] sm:$0xff]
    %v139 = vld [vmem:[#allocation5 + $0x38] sm:$0xff]
    %v140 = vld [vmem:[#allocation5 + $0x40] sm:$0xff]
    %v141 = vld [vmem:[#allocation5 + $0x48] sm:$0xff]
    %v142 = vld [vmem:[#allocation5 + $0x50] sm:$0xff]
    %v143 = vld [vmem:[#allocation5 + $0x58] sm:$0xff]
    %v144 = vld [vmem:[#allocation5 + $0x60] sm:$0xff]
    %v145 = vld [vmem:[#allocation5 + $0x68] sm:$0xff]
    %v146 = vld [vmem:[#allocation5 + $0x70] sm:$0xff]
    %v147 = vld [vmem:[#allocation5 + $0x78] sm:$0xff]
    %v148 = vpack.c.bf16 %v133, %v132
    %v149 = vpack.c.bf16 %v135, %v134
    %v150 = vpack.c.bf16 %v137, %v136
    %v151 = vpack.c.bf16 %v139, %v138
    %v152 = vpack.c.bf16 %v141, %v140
    %v153 = vpack.c.bf16 %v143, %v142
    %v154 = vpack.c.bf16 %v145, %v144
    %v155 = vpack.c.bf16 %v147, %v146
    %v156 = vperm.slane %v51, 3
    %157 = vmatpush.bf16.msra.mxu0 %v155
    %158 = vmatpush.bf16.msra.mxu0 %v154
    %159 = vmatpush.bf16.msra.mxu0 %v153
    %160 = vmatpush.bf16.msra.mxu0 %v152
    %161 = vmatpush.bf16.msra.mxu0 %v151
    %162 = vmatpush.bf16.msra.mxu0 %v150
    %163 = vmatpush.bf16.msra.mxu0 %v149
    %164 = vmatpush.bf16.msra.mxu0 %v148
    %165 = vmatmul.bf16.gmra.mxu0 %v131
    %v166 = vpop.f32.mrf.mxu0
    %v167 = vadd.f32 %v156, %v166
    %v168 = vpop.f32.mrf.mxu0
    %169 = vdwg.mxu0
    %170 = vadd.xlane.f32.xlu0 %v167
    %v171 = vpop.xlane.xlu0 %170
    %v172 = vmul.f32 %v171, %v99
    %v173 = vsub.f32 %v167, %v172
    %v174 = vmul.f32 %v173, %v173
    %175 = vadd.xlane.f32.xlu0 %v174
    %v176 = vpop.xlane.xlu0 %175
    %v177 = vmul.f32 %v176, %v99
    %v178 = vadd.f32 %v177, 1e-05
    %v179 = vrsqrt.pop %v178
    %v180 = vmul.f32 %v179, %v178
    %v181 = vmul.f32 %v180, %v179
    %v182 = vmul.f32 0.5, %v181
    %v183 = vsub.f32 1.5, %v182
    %v184 = vmul.f32 %v179, %v183
    %vm185 = vweird.f32 %v178
    %vm186 = vweird.f32 %v179
    %vm187 = vmor %vm185, %vm186
    %v188 = vsel %vm187, %v179, %v184
    %v189 = vmul.f32 %v173, %v188
    %v190 = vperm.slane %v51, 4
    %v191 = vmul.f32 %v189, %v190
    %v192 = vperm.slane %v51, 5
    %v193 = vadd.f32 %v191, %v192
    %v194 = vmul.f32 %v193, %v193
    %v195 = vmul.f32 %v193, %v194
    %v196 = vmul.f32 %v195, 0.044715
    %v197 = vadd.f32 %v193, %v196
    %v198 = vmul.f32 %v197, 0.7978846
    %v199 = vtanh.pop %v198
    %v200 = vadd.f32 %v199, 1.0
    %v201 = vmul.f32 %v200, 0.5
    %v202 = vmul.f32 %v193, %v201
    %v203 = vadd.f32 %v50, %v202
    %204 = vst [vmem:[#allocation7] sm:$0xff] %v203
    // Predicated region
    $region26: #{residual_block_forward.1} parent=1 // pred_check
      _
    $region27: #{residual_block_forward.1} parent=1 // pred_check_branch
      %206 = sbr.rel (0) target = $region29
    $region28: #{residual_block_forward.1} parent=1 // pred_region
      %208 = vsyncadd [#allocation4], 0
      %s210 = sshll.u32 [#allocation7], 4
      %s211 = int_to_ptr.vmem [resolvable:$true] %s210
      %s212 = sshll.u32 %s4, 4
      %s213 = int_to_ptr.hbm [resolvable:$true] %s212
      %215 = dma.vmem_to_hbm [thread:$0]  %s211, 128, %s213, [#allocation4]
    $region29: #{residual_block_forward.1} parent=1 // pred_fallthru
      _
    // Predicated region
    $region30: #{residual_block_forward.1} parent=1 // pred_check
      _
    $region31: #{residual_block_forward.1} parent=1 // pred_check_branch
      %217 = sbr.rel (0) target = $region33
    $region32: #{residual_block_forward.1} parent=1 // pred_region
      %219 = dma.done [#allocation4], 128
    $region33: #{residual_block_forward.1} parent=1 // pred_fallthru
      _
    %220 = vsyncpa [#allocation3], 1
    %221 = vsyncpa [#allocation6], 1
    %222 = vsyncpa [#allocation4], 1

</llo_original>
